<compile_context>
chip_gen: v6e
topology: v6e:2x2x1
jax: 0.10.0
libtpu: 0.0.40
codegen_flags: <defaults>
</compile_context>

<pallas_src>
import jax
import jax.numpy as jnp
from jax.experimental import pallas as pl
from jax.experimental.pallas import tpu as pltpu


def _pool_kernel(x_ref, sum_ref):
    # x_ref:   (tr, tl)  input tile (input dtype)
    # sum_ref: (tr, 1)   f32 row sums, resident across the HW-tile grid axis
    j = pl.program_id(1)

    @pl.when(j == 0)
    def _():
        sum_ref[...] = jnp.zeros_like(sum_ref)

    # Single cast of the tile; lane reduction goes to the XLU.
    sum_ref[...] += jnp.sum(x_ref[...].astype(jnp.float32), axis=-1,
                            keepdims=True)


def _rescale_kernel(x_ref, s_ref, o_ref):
    # x_ref: (tr, tl) input tile; s_ref: (tr, 1) f32 per-row scale; o_ref: (tr, tl)
    x = x_ref[...]
    # Keep the dominant streaming multiply in the input dtype (bf16 stays bf16
    # on v6e/v7x); the scale itself was computed in f32 upstream.
    o_ref[...] = (x * s_ref[...].astype(x.dtype)).astype(o_ref.dtype)


def _pick_tile(total, unit, cap):
    """Largest multiple of `unit` that divides `total` and is <= cap.
    Falls back to the full extent when `total` is not a multiple of `unit`
    (a block equal to the full dim is always legal)."""
    if total % unit != 0:
        return total
    best = unit
    t = unit
    while t <= min(total, cap):
        if total % t == 0:
            best = t
        t += unit
    return best


def se_block(x_nchw, weight, bias):
    """x_nchw: (N, C, H, W); weight: (C, C) [Conv2d 1x1 squeezed]; bias: (C,)."""
    N, C, H, W = x_nchw.shape
    HW = H * W
    R = N * C
    x2d = x_nchw.reshape(R, HW)
    itemsize = x2d.dtype.itemsize

    # Lane-dense spatial tiles (multiples of 128) and sublane-dense row tiles
    # (multiples of 8), capped so a single buffer stays <= ~4 MiB.
    tl = _pick_tile(HW, 128, 2048)
    max_rows = max(8, (4 * 1024 * 1024) // max(1, tl * itemsize))
    tr = _pick_tile(R, 8, max_rows)

    block_bytes = tr * tl * itemsize
    # 2 double-buffered input blocks + 2 double-buffered output blocks, with
    # headroom; clamp to v7x-safe 64 MiB.
    vmem_limit = int(min(64 * 2 ** 20, max(16 * 2 ** 20, 2 * 4 * block_bytes)))

    n_r = R // tr
    n_l = HW // tl

    # ---- Pass 1: global average pool (tiled f32 row sums, reduction axis last)
    sums = pl.pallas_call(
        _pool_kernel,
        out_shape=jax.ShapeDtypeStruct((R, 1), jnp.float32),
        grid_spec=pltpu.PrefetchScalarGridSpec(
            num_scalar_prefetch=0,
            grid=(n_r, n_l),
            in_specs=[pl.BlockSpec((tr, tl), lambda i, j: (i, j))],
            out_specs=pl.BlockSpec((tr, 1), lambda i, j: (i, 0)),
        ),
        compiler_params=pltpu.CompilerParams(
            dimension_semantics=("parallel", "arbitrary"),
            vmem_limit_bytes=vmem_limit),
    )(x2d)

    # ---- Projection: one (N, C) @ (C, C) 1x1-conv matmul + bias in plain XLA.
    #      (transpose + f32 cast of the weight hoisted out of the kernels)
    mean = sums.reshape(N, C) * (1.0 / HW)
    w_t = weight.astype(jnp.float32).T
    scale = jnp.dot(mean, w_t, preferred_element_type=jnp.float32)
    scale = scale + bias.astype(jnp.float32)[None, :]
    scale = scale.reshape(R, 1)          # f32, one scale per (n, c) row

    # ---- Pass 2: tiled channel-wise rescale (both grid axes parallel).
    out2d = pl.pallas_call(
        _rescale_kernel,
        out_shape=jax.ShapeDtypeStruct((R, HW), x2d.dtype),
        grid_spec=pltpu.PrefetchScalarGridSpec(
            num_scalar_prefetch=0,
            grid=(n_r, n_l),
            in_specs=[
                pl.BlockSpec((tr, tl), lambda i, j: (i, j)),
                pl.BlockSpec((tr, 1), lambda i, j: (i, 0)),
            ],
            out_specs=pl.BlockSpec((tr, tl), lambda i, j: (i, j)),
        ),
        compiler_params=pltpu.CompilerParams(
            dimension_semantics=("parallel", "parallel"),
            vmem_limit_bytes=vmem_limit),
    )(x2d, scale)

    return out2d.reshape(N, C, H, W)


def se_block_ref(x_nchw, weight, bias):
    # Pure-JAX reference for sanity checking.
    mean = jnp.mean(x_nchw, axis=(2, 3))                 # (N, C)
    s = mean @ weight.T + bias                           # (N, C)
    return x_nchw * s[:, :, None, None]


if __name__ == "__main__":
    key = jax.random.PRNGKey(0)
    kx, kw, kb = jax.random.split(key, 3)

    N, C, H, W = 2, 4, 16, 16
    x = jax.random.normal(kx, (N, C, H, W), dtype=jnp.float32)

    # Deterministic synthetic parameters for Conv2d(C, C, kernel_size=1):
    # weight shape (C_out, C_in, 1, 1) squeezed to (C_out, C_in); bias shape (C,)
    fan_in = C  # kernel_size = 1x1
    bound = 1.0 / (fan_in ** 0.5)
    weight = jax.random.uniform(kw, (C, C), jnp.float32, -bound, bound)
    bias = jax.random.uniform(kb, (C,), jnp.float32, -bound, bound)

    out = se_block(x, weight, bias)
    out = jax.block_until_ready(out)

    ref = se_block_ref(x, weight, bias)
    assert out.shape == (N, C, H, W)
    assert jnp.allclose(out, ref, atol=1e-5, rtol=1e-5), "mismatch vs reference"

    print("KERNEL_OK")
</pallas_src>

<mosaic_0001>
module attributes {stable_mosaic.version = 11 : i64} {
  func.func @_pool_kernel(%arg0: i32, %arg1: i32, %arg2: memref<8x256xf32, #tpu.memory_space<vmem>>, %arg3: memref<8x1xf32, #tpu.memory_space<vmem>>) attributes {dimension_semantics = [#tpu.dimension_semantics<parallel>, #tpu.dimension_semantics<arbitrary>], iteration_bounds = array<i64: 1, 1>, scalar_prefetch = 0 : i64, scratch_operands = 0 : i64, tpu.core_type = #tpu.core_type<tc>, window_params = [{transform_indices = @transform_0, window_bounds = array<i64: 8, 256>}, {transform_indices = @transform_1, window_bounds = array<i64: 8, 1>}]} {
    %c0_i32 = arith.constant 0 : i32
    %0 = arith.cmpi eq, %arg1, %c0_i32 : i32
    %1 = arith.extui %0 : i1 to i32
    %c0_i32_0 = arith.constant 0 : i32
    %2 = arith.cmpi ne, %1, %c0_i32_0 : i32
    scf.if %2 {
      %cst_6 = arith.constant 0.000000e+00 : f32
      %9 = vector.broadcast %cst_6 : f32 to vector<8x1xf32>
      %c0_7 = arith.constant 0 : index
      %c0_8 = arith.constant 0 : index
      %10 = vector.load %arg3[%c0_7, %c0_8] : memref<8x1xf32, #tpu.memory_space<vmem>>, vector<8x1xf32>
      tpu.vector_store %arg3[%c0_7, %c0_8], %9 {strides = array<i32>} : memref<8x1xf32, #tpu.memory_space<vmem>>, vector<8x1xf32>,
    } else {
    }
    %c0 = arith.constant 0 : index
    %c0_1 = arith.constant 0 : index
    %3 = vector.load %arg3[%c0, %c0_1] : memref<8x1xf32, #tpu.memory_space<vmem>>, vector<8x1xf32>
    %c0_2 = arith.constant 0 : index
    %c0_3 = arith.constant 0 : index
    %4 = vector.load %arg2[%c0_2, %c0_3] : memref<8x256xf32, #tpu.memory_space<vmem>>, vector<8x256xf32>
    %cst = arith.constant dense<0.000000e+00> : vector<8xf32>
    %5 = vector.multi_reduction <add>, %4, %cst [1] : vector<8x256xf32> to vector<8xf32>
    %6 = vector.shape_cast %5 : vector<8xf32> to vector<8x1xf32>
    %7 = arith.addf %3, %6 : vector<8x1xf32>
    %c0_4 = arith.constant 0 : index
    %c0_5 = arith.constant 0 : index
    %8 = vector.load %arg3[%c0_4, %c0_5] : memref<8x1xf32, #tpu.memory_space<vmem>>, vector<8x1xf32>
    tpu.vector_store %arg3[%c0_4, %c0_5], %7 {strides = array<i32>} : memref<8x1xf32, #tpu.memory_space<vmem>>, vector<8x1xf32>,
    return
  }
  func.func @transform_0(%arg0: i32, %arg1: i32) -> (i32, i32) {
    %c0_i32 = arith.constant 0 : i32
    return %arg0, %arg1 : i32, i32
  }
  func.func @transform_1(%arg0: i32, %arg1: i32) -> (i32, i32) {
    %c0_i32 = arith.constant 0 : i32
    %c0_i32_0 = arith.constant 0 : i32
    return %arg0, %c0_i32 : i32, i32
  }
}

</mosaic_0001>

<llo_original>
// kernel: tpu_custom_call.1
$region0: #{tpu_custom_call.1}
  #allocation0 [shape = 'u32[]', space=smem, size = 0x4, offset = 0x4, fixed_abs, tag = 'smem constant byte address 0x4 - core index']
  #allocation1 [shape = 'u32[144,128]{1,0:T(1,128)}', space=vmem, size = 0x12000, scoped, tag = 'internal scratch']
  %s0 = inlined_call_operand.hbm [shape: f32[8,256], index: 0, kind: input, shape index: {}]
  %s1 = inlined_call_operand.vmem [shape: f32[8,1], index: 1, kind: output, shape index: {}]
  %s2 = sld [smem:[#allocation0]]
  $region22: #{tpu_custom_call.1} parent=0
    _
  %s4 = ssub.s32 1, %s2
  %s5 = scalar_select 0, %s4, %s2
  $region1: #{tpu_custom_call.1} parent=0
    #allocation2 [shape = 'u8[8192]{0}', space=vmem, size = 0x2000, scoped, tag = 'input window, operand 0, single buffered']
    #allocation3 [shape = 's32[1]{0}', space=sflag, size = 0x4, scoped, tag = 'scoped memory for tpu_custom_call.1']
    %6 = vsyncpa [#allocation3], 0
    // Predicated region
    $region2: #{tpu_custom_call.1} parent=1 // pred_check
      _
    $region3: #{tpu_custom_call.1} parent=1 // pred_check_branch
      %8 = sbr.rel (0) target = $region5
    $region4: #{tpu_custom_call.1} parent=1 // pred_region
      %s10 = ssub.s32 256, 256
      %11 = vsyncadd [#allocation3], %s10
      %s13 = sshll.u32 [#allocation2], 4
      %s14 = int_to_ptr.vmem [resolvable:$true] %s13
      %16 = dma.hbm_to_vmem [thread:$0]  %s0, 256, %s14, [#allocation3]
    $region5: #{tpu_custom_call.1} parent=1 // pred_fallthru
      _
    // Predicated region
    $region6: #{tpu_custom_call.1} parent=1 // pred_check
      _
    $region7: #{tpu_custom_call.1} parent=1 // pred_check_branch
      %18 = sbr.rel (0) target = $region9
    $region8: #{tpu_custom_call.1} parent=1 // pred_region
      %19 = dma.done [#allocation3], 256
    $region9: #{tpu_custom_call.1} parent=1 // pred_fallthru
      _
    %p20 = scmp.eq.s32.totalorder 0, 0
    // Predicated region
    $region10: #{tpu_custom_call.1} parent=1 // pred_check
      %p21 = pneg %p20
    $region11: #{tpu_custom_call.1} parent=1 // pred_check_branch
      %23 = sbr.rel (%p21) target = $region13
    $region12: #{tpu_custom_call.1} parent=1 // pred_region
      %vm24 = vcmask 7168
      %25 = vst.msk [vmem:[%s1] sm:$0xff] %vm24, 0.0
    $region13: #{tpu_custom_call.1} parent=1 // pred_fallthru
      _
    %v26 = vld [vmem:[%s1] sm:$0xff]
    %v27 = vld [vmem:[#allocation2] sm:$0xff]
    %v28 = vld [vmem:[#allocation2 + $0x8] sm:$0xff]
    %v29 = vadd.f32 %v27, %v28
    %30 = vadd.xlane.f32.xlu0 %v29
    %v31 = vpop.xlane.xlu0 %30
    %v32 = vadd.f32 %v26, %v31
    %vm33 = vcmask 7168
    %34 = vst.msk [vmem:[%s1] sm:$0xff] %vm33, %v32
    // Predicated region
    $region14: #{tpu_custom_call.1} parent=1 // pred_check
      _
    $region15: #{tpu_custom_call.1} parent=1 // pred_check_branch
      %36 = sbr.rel (0) target = $region17
    $region16: #{tpu_custom_call.1} parent=1 // pred_region
      _
    $region17: #{tpu_custom_call.1} parent=1 // pred_fallthru
      _
    // Predicated region
    $region18: #{tpu_custom_call.1} parent=1 // pred_check
      _
    $region19: #{tpu_custom_call.1} parent=1 // pred_check_branch
      %38 = sbr.rel (0) target = $region21
    $region20: #{tpu_custom_call.1} parent=1 // pred_region
      _
    $region21: #{tpu_custom_call.1} parent=1 // pred_fallthru
      _
    %39 = vsyncpa [#allocation3], 1

</llo_original>
